<compile_context>
chip_gen: v6e
topology: v6e:2x2x1
jax: 0.10.0
libtpu: 0.0.40
codegen_flags: <defaults>
</compile_context>

<pallas_src>
import math
import functools

import jax
import jax.numpy as jnp
from jax import lax
from jax.experimental import pallas as pl
from jax.experimental.pallas import tpu as pltpu


def _attn_head_kernel(x_ref, wqkv_ref, bqkv_ref, out_ref, probs_ref, *,
                      seq_len, head_size):
    # x_ref:    (Bt*N, D)     -- pre-flattened in the wrapper
    # wqkv_ref: (D, 3H)       -- fused, query part pre-scaled by 1/sqrt(H)
    # bqkv_ref: (1, 3H)
    # out_ref:  (Bt, N*H)     -- lane-dense slab
    # probs_ref:(Bt, N*N)     -- lane-dense slab
    N, H = seq_len, head_size
    Bt = out_ref.shape[0]

    # Fused QKV projection on the MXU: one (Bt*N, D) @ (D, 3H) matmul.
    qkv = jnp.dot(x_ref[...], wqkv_ref[...], preferred_element_type=jnp.float32)
    qkv = (qkv + bqkv_ref[...]).reshape(Bt, N, 3 * H)  # sublane-only split (cheap)

    q = qkv[:, :, 0 * H:1 * H]   # 1/sqrt(H) already folded into wq/bq
    k = qkv[:, :, 1 * H:2 * H]
    v = qkv[:, :, 2 * H:3 * H]

    # Batched NT matmul: scores[b, n, m] = sum_h q[b, n, h] * k[b, m, h]
    scores = lax.dot_general(
        q, k,
        dimension_numbers=(((2,), (2,)), ((0,), (0,))),
        preferred_element_type=jnp.float32)                    # (Bt, N, N)

    # Numerically stable softmax over the last axis.
    m = jnp.max(scores, axis=-1, keepdims=True)
    e = jnp.exp(scores - m)
    denom = jnp.sum(e, axis=-1, keepdims=True)
    # Exact reciprocal: probs is an output checked against the reference to 1e-5.
    probs = e * pl.reciprocal(denom, approx=False)

    # Dropout == identity (eval mode).
    out = lax.dot_general(
        probs, v,
        dimension_numbers=(((2,), (1,)), ((0,), (0,))),
        preferred_element_type=jnp.float32)                    # (Bt, N, H)

    # Write lane-dense slabs (full-width vst instead of 8/128 or 16/128 masked).
    out_ref[...] = out.reshape(Bt, N * H).astype(out_ref.dtype)
    probs_ref[...] = probs.reshape(Bt, N * N).astype(probs_ref.dtype)


def _vmem_budget_bytes():
    """(vmem_limit_bytes for CompilerParams, per-step tile-selection budget)."""
    try:
        cap = int(pltpu.get_tpu_info().vmem_capacity_bytes)
    except Exception:
        cap = 64 << 20  # conservative: v7x has 64 MiB physical VMEM per TensorCore
    vmem_limit = min(cap * 3 // 4, 112 << 20)   # leave headroom for compiler scratch
    budget = vmem_limit * 3 // 5                # what the tile picker may spend
    return vmem_limit, budget


def _pick_batch_tile(B, N, D, H, budget_bytes):
    """Largest divisor of B whose per-step f32 footprint fits the budget,
    keeping grid_b >= 2 (dual-TC v7x) and preferring MXU-aligned Bt*N."""
    # Per batch element: double-buffered pipeline blocks (x, out, probs) plus
    # simultaneously-live intermediates (qkv + q/k/v views, scores, exp, probs
    # value, out value).
    per_b = 4 * N * (2 * D          # x block (double buffered)
                     + 2 * H        # out block (double buffered)
                     + 2 * N        # probs block (double buffered)
                     + 2 * 3 * H    # qkv value + q/k/v views
                     + 3 * N        # scores, exp(scores), probs value
                     + H)           # out value
    fixed = 4 * (2 * D * 3 * H + 2 * 3 * H)   # resident fused weights + bias
    cap = max(1, (budget_bytes - fixed) // max(per_b, 1))
    cap = min(cap, B)
    if B >= 2:
        # Keep at least 2 grid steps so the "parallel" batch axis can shard
        # across both TensorCores on v7x; negligible cost on 1-TC chips.
        cap = max(1, min(cap, B // 2))
    divisors = [d for d in range(1, cap + 1) if B % d == 0]
    # Prefer a tile whose fused-QKV matmul M dimension (Bt*N) fills MXU rows.
    aligned = [d for d in divisors if (d * N) % 128 == 0]
    return (aligned or divisors)[-1]


def attention_head(x, wq, bq, wk, bk, wv, bv, *, attention_head_size,
                   batch_tile=None):
    """x: (B, N, D) float32. Weights: (D, H). Biases: (H,).
    Returns (attention_output (B, N, H), attention_probs (B, N, N))."""
    B, N, D = x.shape
    H = attention_head_size
    scale = 1.0 / math.sqrt(H)

    # Fuse QKV and fold the score scale into the query projection.
    # NOTE: in a real model, build these once per parameter set (or jit this
    # wrapper) instead of re-concatenating the weights on every call.
    w_qkv = jnp.concatenate([wq * scale, wk, wv], axis=1)            # (D, 3H)
    b_qkv = jnp.concatenate([bq * scale, bk, bv], axis=0).reshape(1, 3 * H)

    vmem_limit, budget = _vmem_budget_bytes()
    if batch_tile is None:
        batch_tile = _pick_batch_tile(B, N, D, H, budget)
    assert B % batch_tile == 0
    grid_b = B // batch_tile

    # Flatten in the wrapper (free metadata reshape) so the kernel's DMA lands
    # already flat: (B, N, D) -> (grid_b, batch_tile*N, D).
    xg = x.reshape(grid_b, batch_tile * N, D)

    kernel = functools.partial(_attn_head_kernel, seq_len=N, head_size=H)

    out_flat, probs_flat = pl.pallas_call(
        kernel,
        out_shape=(
            jax.ShapeDtypeStruct((grid_b, batch_tile, N * H), x.dtype),
            jax.ShapeDtypeStruct((grid_b, batch_tile, N * N), x.dtype),
        ),
        grid_spec=pltpu.PrefetchScalarGridSpec(
            num_scalar_prefetch=0,
            grid=(grid_b,),
            in_specs=[
                # Leading grid dim squeezed; last two block dims == full array
                # dims, so the (8,128) block constraint is always satisfied.
                pl.BlockSpec((None, batch_tile * N, D), lambda b: (b, 0, 0)),  # x
                pl.BlockSpec((D, 3 * H), lambda b: (0, 0)),                    # W_qkv
                pl.BlockSpec((1, 3 * H), lambda b: (0, 0)),                    # b_qkv
            ],
            out_specs=[
                pl.BlockSpec((None, batch_tile, N * H), lambda b: (b, 0, 0)),
                pl.BlockSpec((None, batch_tile, N * N), lambda b: (b, 0, 0)),
            ],
        ),
        compiler_params=pltpu.CompilerParams(
            dimension_semantics=("parallel",),
            vmem_limit_bytes=vmem_limit),
    )(xg, w_qkv, b_qkv)

    # Free contiguous reshapes back to the module's output layout.
    return out_flat.reshape(B, N, H), probs_flat.reshape(B, N, N)


def _reference(x, wq, bq, wk, bk, wv, bv, head_size):
    q = x @ wq + bq
    k = x @ wk + bk
    v = x @ wv + bv
    s = jnp.einsum("bnd,bmd->bnm", q, k) / math.sqrt(head_size)
    p = jax.nn.softmax(s, axis=-1)
    return p @ v, p


if __name__ == "__main__":
    # Small shapes consistent with the module: batch=2, seq=8, hidden=32, head=16
    B, N, D, H = 2, 8, 32, 16

    key = jax.random.PRNGKey(0)
    kx, kq, kk, kv, kbq, kbk, kbv = jax.random.split(key, 7)

    x = jax.random.normal(kx, (B, N, D), dtype=jnp.float32)

    # nn.Linear(hidden_size, attention_head_size) weights, stored transposed (D, H)
    bound = 1.0 / math.sqrt(D)
    wq = jax.random.uniform(kq, (D, H), jnp.float32, -bound, bound)
    wk = jax.random.uniform(kk, (D, H), jnp.float32, -bound, bound)
    wv = jax.random.uniform(kv, (D, H), jnp.float32, -bound, bound)
    bq = jax.random.uniform(kbq, (H,), jnp.float32, -bound, bound)
    bk = jax.random.uniform(kbk, (H,), jnp.float32, -bound, bound)
    bv = jax.random.uniform(kbv, (H,), jnp.float32, -bound, bound)

    out, probs = attention_head(x, wq, bq, wk, bk, wv, bv, attention_head_size=H)
    out = jax.block_until_ready(out)
    probs = jax.block_until_ready(probs)

    ref_out, ref_probs = _reference(x, wq, bq, wk, bk, wv, bv, H)
    assert out.shape == (B, N, H) and probs.shape == (B, N, N)
    assert jnp.allclose(out, ref_out, atol=1e-5, rtol=1e-5)
    assert jnp.allclose(probs, ref_probs, atol=1e-5, rtol=1e-5)

    print("KERNEL_OK")
</pallas_src>

<mosaic_0001>
module attributes {stable_mosaic.version = 11 : i64} {
  func.func @_attn_head_kernel(%arg0: i32, %arg1: memref<1x8x32xf32, #tpu.memory_space<vmem>>, %arg2: memref<32x48xf32, #tpu.memory_space<vmem>>, %arg3: memref<1x48xf32, #tpu.memory_space<vmem>>, %arg4: memref<1x1x128xf32, #tpu.memory_space<vmem>>, %arg5: memref<1x1x64xf32, #tpu.memory_space<vmem>>) attributes {dimension_semantics = [#tpu.dimension_semantics<parallel>], iteration_bounds = array<i64: 2>, scalar_prefetch = 0 : i64, scratch_operands = 0 : i64, tpu.core_type = #tpu.core_type<tc>, window_params = [{transform_indices = @transform_0, window_bounds = array<i64: 1, 8, 32>}, {pipeline_mode = #tpu.pipeline_mode<synchronous>, transform_indices = @transform_1, window_bounds = array<i64: 32, 48>}, {pipeline_mode = #tpu.pipeline_mode<synchronous>, transform_indices = @transform_2, window_bounds = array<i64: 1, 48>}, {transform_indices = @transform_3, window_bounds = array<i64: 1, 1, 128>}, {transform_indices = @transform_4, window_bounds = array<i64: 1, 1, 64>}]} {
    %c0 = arith.constant 0 : index
    %c0_0 = arith.constant 0 : index
    %c0_1 = arith.constant 0 : index
    %0 = vector.load %arg1[%c0, %c0_0, %c0_1] : memref<1x8x32xf32, #tpu.memory_space<vmem>>, vector<1x8x32xf32>
    %1 = vector.shape_cast %0 : vector<1x8x32xf32> to vector<8x32xf32>
    %c0_2 = arith.constant 0 : index
    %c0_3 = arith.constant 0 : index
    %2 = vector.load %arg2[%c0_2, %c0_3] : memref<32x48xf32, #tpu.memory_space<vmem>>, vector<32x48xf32>
    %cst = arith.constant dense<0.000000e+00> : vector<8x48xf32>
    %3 = tpu.matmul %1, %2, %cst {dimension_numbers = #tpu.dot_dimension_numbers<[1], [0], [0], [1], [0, 0, 1, 1], [], []>} : vector<8x32xf32>, vector<32x48xf32>, vector<8x48xf32> -> vector<8x48xf32>
    %c0_4 = arith.constant 0 : index
    %c0_5 = arith.constant 0 : index
    %4 = vector.load %arg3[%c0_4, %c0_5] : memref<1x48xf32, #tpu.memory_space<vmem>>, vector<1x48xf32>
    %5 = vector.broadcast %4 : vector<1x48xf32> to vector<8x48xf32>
    %6 = arith.addf %3, %5 : vector<8x48xf32>
    %7 = vector.shape_cast %6 : vector<8x48xf32> to vector<1x8x48xf32>
    %8 = vector.extract_strided_slice %7 {offsets = [0, 0, 0], sizes = [1, 8, 16], strides = [1, 1, 1]} : vector<1x8x48xf32> to vector<1x8x16xf32>
    %9 = vector.extract_strided_slice %7 {offsets = [0, 0, 16], sizes = [1, 8, 16], strides = [1, 1, 1]} : vector<1x8x48xf32> to vector<1x8x16xf32>
    %10 = vector.extract_strided_slice %7 {offsets = [0, 0, 32], sizes = [1, 8, 16], strides = [1, 1, 1]} : vector<1x8x48xf32> to vector<1x8x16xf32>
    %cst_6 = arith.constant dense<0.000000e+00> : vector<1x8x8xf32>
    %11 = tpu.matmul %8, %9, %cst_6 {dimension_numbers = #tpu.dot_dimension_numbers<[2], [2], [1], [1], [0, 0, 0, 1, 1, 1], [0], [0]>} : vector<1x8x16xf32>, vector<1x8x16xf32>, vector<1x8x8xf32> -> vector<1x8x8xf32>
    %cst_7 = arith.constant dense<0xFF800000> : vector<1x8xf32>
    %12 = vector.multi_reduction <maximumf>, %11, %cst_7 [2] : vector<1x8x8xf32> to vector<1x8xf32>
    %13 = vector.shape_cast %12 : vector<1x8xf32> to vector<1x8x1xf32>
    %14 = vector.broadcast %13 : vector<1x8x1xf32> to vector<1x8x8xf32>
    %15 = arith.subf %11, %14 : vector<1x8x8xf32>
    %16 = math.exp %15 : vector<1x8x8xf32>
    %cst_8 = arith.constant dense<0.000000e+00> : vector<1x8xf32>
    %17 = vector.multi_reduction <add>, %16, %cst_8 [2] : vector<1x8x8xf32> to vector<1x8xf32>
    %18 = vector.shape_cast %17 : vector<1x8xf32> to vector<1x8x1xf32>
    %19 = tpu.reciprocal %18 : vector<1x8x1xf32> -> vector<1x8x1xf32>
    %20 = vector.broadcast %19 : vector<1x8x1xf32> to vector<1x8x8xf32>
    %21 = arith.mulf %16, %20 : vector<1x8x8xf32>
    %cst_9 = arith.constant dense<0.000000e+00> : vector<1x8x16xf32>
    %22 = tpu.matmul %21, %10, %cst_9 {dimension_numbers = #tpu.dot_dimension_numbers<[2], [1], [1], [2], [0, 0, 0, 1, 1, 2], [0], [0]>} : vector<1x8x8xf32>, vector<1x8x16xf32>, vector<1x8x16xf32> -> vector<1x8x16xf32>
    %23 = vector.shape_cast %22 : vector<1x8x16xf32> to vector<1x128xf32>
    %c0_10 = arith.constant 0 : index
    %c0_11 = arith.constant 0 : index
    %c0_12 = arith.constant 0 : index
    %24 = vector.load %arg4[%c0_10, %c0_11, %c0_12] : memref<1x1x128xf32, #tpu.memory_space<vmem>>, vector<1x1x128xf32>
    %25 = vector.shape_cast %24 : vector<1x1x128xf32> to vector<1x128xf32>
    %26 = vector.shape_cast %23 : vector<1x128xf32> to vector<1x1x128xf32>
    tpu.vector_store %arg4[%c0_10, %c0_11, %c0_12], %26 {strides = array<i32>} : memref<1x1x128xf32, #tpu.memory_space<vmem>>, vector<1x1x128xf32>,
    %27 = vector.shape_cast %21 : vector<1x8x8xf32> to vector<1x64xf32>
    %c0_13 = arith.constant 0 : index
    %c0_14 = arith.constant 0 : index
    %c0_15 = arith.constant 0 : index
    %28 = vector.load %arg5[%c0_13, %c0_14, %c0_15] : memref<1x1x64xf32, #tpu.memory_space<vmem>>, vector<1x1x64xf32>
    %29 = vector.shape_cast %28 : vector<1x1x64xf32> to vector<1x64xf32>
    %30 = vector.shape_cast %27 : vector<1x64xf32> to vector<1x1x64xf32>
    tpu.vector_store %arg5[%c0_13, %c0_14, %c0_15], %30 {strides = array<i32>} : memref<1x1x64xf32, #tpu.memory_space<vmem>>, vector<1x1x64xf32>,
    return
  }
  func.func @transform_0(%arg0: i32) -> (i32, i32, i32) {
    %c0_i32 = arith.constant 0 : i32
    %c0_i32_0 = arith.constant 0 : i32
    %c0_i32_1 = arith.constant 0 : i32
    return %arg0, %c0_i32, %c0_i32_0 : i32, i32, i32
  }
  func.func @transform_1(%arg0: i32) -> (i32, i32) {
    %c0_i32 = arith.constant 0 : i32
    %c0_i32_0 = arith.constant 0 : i32
    %c0_i32_1 = arith.constant 0 : i32
    return %c0_i32, %c0_i32_0 : i32, i32
  }
  func.func @transform_2(%arg0: i32) -> (i32, i32) {
    %c0_i32 = arith.constant 0 : i32
    %c0_i32_0 = arith.constant 0 : i32
    %c0_i32_1 = arith.constant 0 : i32
    return %c0_i32, %c0_i32_0 : i32, i32
  }
  func.func @transform_3(%arg0: i32) -> (i32, i32, i32) {
    %c0_i32 = arith.constant 0 : i32
    %c0_i32_0 = arith.constant 0 : i32
    %c0_i32_1 = arith.constant 0 : i32
    return %arg0, %c0_i32, %c0_i32_0 : i32, i32, i32
  }
  func.func @transform_4(%arg0: i32) -> (i32, i32, i32) {
    %c0_i32 = arith.constant 0 : i32
    %c0_i32_0 = arith.constant 0 : i32
    %c0_i32_1 = arith.constant 0 : i32
    return %arg0, %c0_i32, %c0_i32_0 : i32, i32, i32
  }
}

</mosaic_0001>

<llo_original>
// kernel: tpu_custom_call.1
$region0: #{tpu_custom_call.1}
  #allocation0 [shape = 'u32[]', space=smem, size = 0x4, offset = 0x4, fixed_abs, tag = 'smem constant byte address 0x4 - core index']
  #allocation1 [shape = 'u32[144,128]{1,0:T(1,128)}', space=vmem, size = 0x12000, scoped, tag = 'internal scratch']
  %s0 = inlined_call_operand.hbm [shape: f32[2,8,32], index: 0, kind: input, shape index: {}]
  %s1 = inlined_call_operand.hbm [shape: f32[32,48], index: 1, kind: input, shape index: {}]
  %s2 = inlined_call_operand.vmem [shape: f32[1,48], index: 2, kind: input, shape index: {}]
  %s3 = inlined_call_operand.hbm [shape: f32[2,1,128], index: 3, kind: output, shape index: {0}]
  %s4 = inlined_call_operand.hbm [shape: f32[2,1,64], index: 4, kind: output, shape index: {1}]
  %5 = xla_tuple %s3, %s4
  %s6 = sld [smem:[#allocation0]]
  $region61: #{tpu_custom_call.1} parent=0
    _
  %s8 = ssub.s32 1, %s6
  %s9 = scalar_select 0, %s8, %s6
  $region1: #{tpu_custom_call.1} parent=0
    #allocation2 [shape = 'u8[8192]{0}', space=vmem, size = 0x2000, scoped, tag = 'input window, operand 0']
    #allocation3 [shape = 's32[2]{0}', space=sflag, size = 0x8, scoped, tag = 'scoped memory for tpu_custom_call.1']
    #allocation4 [shape = 's32[2]{0}', space=sflag, size = 0x8, scoped, tag = 'scoped memory for tpu_custom_call.1']
    #allocation5 [shape = 'u8[16384]{0}', space=vmem, size = 0x4000, scoped, tag = 'input window, operand 1, single buffered']
    #allocation6 [shape = 's32[1]{0}', space=sflag, size = 0x4, scoped, tag = 'scoped memory for tpu_custom_call.1']
    #allocation7 [shape = 'u8[1024]{0}', space=vmem, size = 0x400, scoped, tag = 'output window, operand 0']
    #allocation8 [shape = 'u8[1024]{0}', space=vmem, size = 0x400, scoped, tag = 'output window, operand 1']
    #allocation9 [shape = 's32[2]{0}', space=sflag, size = 0x8, scoped, tag = 'scoped memory for tpu_custom_call.1']
    %10 = vsyncpa [#allocation3], 0
    %s11 = scalar_lea.sflag [#allocation3], 1
    %12 = vsyncpa %s11, 0
    %13 = vsyncpa [#allocation6], 0
    %14 = vsyncpa [#allocation4], 0
    %s15 = scalar_lea.sflag [#allocation4], 1
    %16 = vsyncpa %s15, 0
    %17 = vsyncpa [#allocation9], 0
    %s18 = scalar_lea.sflag [#allocation9], 1
    %19 = vsyncpa %s18, 0
    loop: start=0, step=1, limit=4
    $region2: #{tpu_custom_call.1} parent=1 // loop_pre_header
      _
    $region3: #{tpu_custom_call.1} parent=1 // loop_header
      %s21 = sphi 0, %s25
      %p22 = scmp.ge.s32.totalorder %s21, 4
      %s31 = sphi 0, %s33
      %s34 = sphi 0, %s31
      %s35 = sphi 0, %s34
      %s51 = sphi 0, %s35
      %s55 = sphi 0, %s55
      %s57 = sphi 0, %s55
      %s58 = sphi 0, %s57
      %s72 = sphi 0, %s58
      %s76 = sphi 0, %s76
      %s78 = sphi 0, %s76
      %s79 = sphi 0, %s78
      %s93 = sphi 0, %s79
      %s99 = sphi 0, %s101
      %s102 = sphi 0, %s99
      %s103 = sphi 0, %s102
      %s119 = sphi 0, %s103
      %s125 = sphi 0, %s127
      %s128 = sphi 0, %s125
      %s129 = sphi 0, %s128
      %s145 = sphi 0, %s129
    $region4: #{tpu_custom_call.1} parent=1 // loop_header_branch
      %24 = sbr.rel (%p22) target = $region8
    $region5: #{tpu_custom_call.1} parent=1 // loop_body
      %s26 = ssub.s32 %s21, 1
      %s27 = ssub.s32 %s21, 2
      %s28 = sadd.s32 %s21, 1
      %s29 = ssub.s32 %s21, %s28
      %p30 = scmp.eq.s32.totalorder %s29, 0
      %s32 = sadd.s32 %s31, 1
      %s33 = scalar_select %p30, %s31, %s32
      %p36 = pneg %p30
      %p37 = scmp.eq.s32.totalorder %s21, 1
      %p38 = por %p36, %p37
      %p39 = scmp.ne.s32.totalorder %s31, %s34
      %p40 = scmp.eq.s32.totalorder %s21, 0
      %p41 = por %p39, %p40
      %p42 = scmp.ne.s32.totalorder %s31, %s34
      %p43 = scmp.eq.s32.totalorder %s26, 1
      %p44 = por %p42, %p43
      %p45 = scmp.ne.s32.totalorder %s34, %s35
      %p46 = scmp.eq.s32.totalorder %s26, 0
      %p47 = por %p45, %p46
      %p48 = scmp.ne.s32.totalorder %s34, %s35
      %p49 = scmp.eq.s32.totalorder %s27, 1
      %p50 = por %p48, %p49
      %p52 = scmp.ne.s32.totalorder %s35, %s51
      %p53 = scmp.eq.s32.totalorder %s27, 0
      %p54 = por %p52, %p53
      %s56 = sadd.s32 %s55, 1
      %p59 = scmp.eq.s32.totalorder %s21, 1
      %p60 = scmp.ne.s32.totalorder %s55, %s57
      %p61 = scmp.eq.s32.totalorder %s21, 0
      %p62 = por %p60, %p61
      %p63 = scmp.ne.s32.totalorder %s55, %s57
      %p64 = scmp.eq.s32.totalorder %s26, 1
      %p65 = por %p63, %p64
      %p66 = scmp.ne.s32.totalorder %s57, %s58
      %p67 = scmp.eq.s32.totalorder %s26, 0
      %p68 = por %p66, %p67
      %p69 = scmp.ne.s32.totalorder %s57, %s58
      %p70 = scmp.eq.s32.totalorder %s27, 1
      %p71 = por %p69, %p70
      %p73 = scmp.ne.s32.totalorder %s58, %s72
      %p74 = scmp.eq.s32.totalorder %s27, 0
      %p75 = por %p73, %p74
      %s77 = sadd.s32 %s76, 1
      %p80 = scmp.eq.s32.totalorder %s21, 1
      %p81 = scmp.ne.s32.totalorder %s76, %s78
      %p82 = scmp.eq.s32.totalorder %s21, 0
      %p83 = por %p81, %p82
      %p84 = scmp.ne.s32.totalorder %s76, %s78
      %p85 = scmp.eq.s32.totalorder %s26, 1
      %p86 = por %p84, %p85
      %p87 = scmp.ne.s32.totalorder %s78, %s79
      %p88 = scmp.eq.s32.totalorder %s26, 0
      %p89 = por %p87, %p88
      %p90 = scmp.ne.s32.totalorder %s78, %s79
      %p91 = scmp.eq.s32.totalorder %s27, 1
      %p92 = por %p90, %p91
      %p94 = scmp.ne.s32.totalorder %s79, %s93
      %p95 = scmp.eq.s32.totalorder %s27, 0
      %p96 = por %p94, %p95
      %s97 = ssub.s32 %s21, %s28
      %p98 = scmp.eq.s32.totalorder %s97, 0
      %s100 = sadd.s32 %s99, 1
      %s101 = scalar_select %p98, %s99, %s100
      %p104 = pneg %p98
      %p105 = scmp.eq.s32.totalorder %s21, 1
      %p106 = por %p104, %p105
      %p107 = scmp.ne.s32.totalorder %s99, %s102
      %p108 = scmp.eq.s32.totalorder %s21, 0
      %p109 = por %p107, %p108
      %p110 = scmp.ne.s32.totalorder %s99, %s102
      %p111 = scmp.eq.s32.totalorder %s26, 1
      %p112 = por %p110, %p111
      %p113 = scmp.ne.s32.totalorder %s102, %s103
      %p114 = scmp.eq.s32.totalorder %s26, 0
      %p115 = por %p113, %p114
      %p116 = scmp.ne.s32.totalorder %s102, %s103
      %p117 = scmp.eq.s32.totalorder %s27, 1
      %p118 = por %p116, %p117
      %p120 = scmp.ne.s32.totalorder %s103, %s119
      %p121 = scmp.eq.s32.totalorder %s27, 0
      %p122 = por %p120, %p121
      %s123 = ssub.s32 %s21, %s28
      %p124 = scmp.eq.s32.totalorder %s123, 0
      %s126 = sadd.s32 %s125, 1
      %s127 = scalar_select %p124, %s125, %s126
      %p130 = pneg %p124
      %p131 = scmp.eq.s32.totalorder %s21, 1
      %p132 = por %p130, %p131
      %p133 = scmp.ne.s32.totalorder %s125, %s128
      %p134 = scmp.eq.s32.totalorder %s21, 0
      %p135 = por %p133, %p134
      %p136 = scmp.ne.s32.totalorder %s125, %s128
      %p137 = scmp.eq.s32.totalorder %s26, 1
      %p138 = por %p136, %p137
      %p139 = scmp.ne.s32.totalorder %s128, %s129
      %p140 = scmp.eq.s32.totalorder %s26, 0
      %p141 = por %p139, %p140
      %p142 = scmp.ne.s32.totalorder %s128, %s129
      %p143 = scmp.eq.s32.totalorder %s27, 1
      %p144 = por %p142, %p143
      %p146 = scmp.ne.s32.totalorder %s129, %s145
      %p147 = scmp.eq.s32.totalorder %s27, 0
      %p148 = por %p146, %p147
      %p149 = scmp.le.s32.totalorder 1, %s21
      %p150 = scmp.lt.s32.totalorder %s21, 3
      %p151 = pnand %p149, %p150
      %p152 = pneg %p151
      // Predicated region
      $region9: #{tpu_custom_call.1} parent=5 // pred_check
        _
      $region10: #{tpu_custom_call.1} parent=5 // pred_check_branch
        %154 = sbr.rel (%p151) target = $region12
      $region11: #{tpu_custom_call.1} parent=5 // pred_region
        %s155 = ssub.s32 %s21, 1
        // Predicated region
        $region13: #{tpu_custom_call.1} parent=11 // pred_check
          %p156 = pneg %p68
        $region14: #{tpu_custom_call.1} parent=11 // pred_check_branch
          %158 = sbr.rel (%p156) target = $region16
        $region15: #{tpu_custom_call.1} parent=11 // pred_region
          %s160 = ssub.s32 512, 512
          %161 = vsyncadd [#allocation6], %s160
          %s162 = sshll.u32 [#allocation5], 4
          %s163 = int_to_ptr.vmem [resolvable:$true] %s162
          %168 = dma.hbm_to_vmem [thread:$0]  %s1, 512, %s163, [#allocation6], 128, 128, 8
        $region16: #{tpu_custom_call.1} parent=11 // pred_fallthru
          _
        // Predicated region
        $region17: #{tpu_custom_call.1} parent=11 // pred_check
          %p169 = pneg %p89
        $region18: #{tpu_custom_call.1} parent=11 // pred_check_branch
          %171 = sbr.rel (%p169) target = $region20
        $region19: #{tpu_custom_call.1} parent=11 // pred_region
          _
        $region20: #{tpu_custom_call.1} parent=11 // pred_fallthru
          _
      $region12: #{tpu_custom_call.1} parent=5 // pred_fallthru
        _
      %p172 = scmp.lt.s32.totalorder %s21, 2
      // Predicated region
      $region21: #{tpu_custom_call.1} parent=5 // pred_check
        %p173 = pneg %p172
      $region22: #{tpu_custom_call.1} parent=5 // pred_check_branch
        %175 = sbr.rel (%p173) target = $region24
      $region23: #{tpu_custom_call.1} parent=5 // pred_region
        // Predicated region
        $region25: #{tpu_custom_call.1} parent=23 // pred_check
          %p176 = pneg %p41
        $region26: #{tpu_custom_call.1} parent=23 // pred_check_branch
          %178 = sbr.rel (%p176) target = $region28
        $region27: #{tpu_custom_call.1} parent=23 // pred_region
          %s179 = sand.u32 %s31, 1
          %s180 = scalar_lea.sflag [#allocation3], %s179
          %s181 = sand.u32 %s31, 1
          %s182 = smul.addr %s181, 8
          %s183 = scalar_lea.vmem [#allocation2], %s182
          %s185 = ssub.s32 128, 128
          %186 = vsyncadd %s180, %s185
          %s187 = smul.addr %s21, 128
          %s188 = scalar_lea.hbm %s0, %s187
          %s190 = sshll.u32 %s183, 4
          %s191 = int_to_ptr.vmem [resolvable:$true] %s190
          %193 = dma.hbm_to_vmem [thread:$0]  %s188, 128, %s191, %s180
        $region28: #{tpu_custom_call.1} parent=23 // pred_fallthru
          _
      $region24: #{tpu_custom_call.1} parent=5 // pred_fallthru
        _
      %p194 = scmp.le.s32.totalorder 1, %s21
      %p195 = scmp.lt.s32.totalorder %s21, 3
      %p196 = pnand %p194, %p195
      %p197 = pneg %p196
      // Predicated region
      $region29: #{tpu_custom_call.1} parent=5 // pred_check
        _
      $region30: #{tpu_custom_call.1} parent=5 // pred_check_branch
        %199 = sbr.rel (%p196) target = $region32
      $region31: #{tpu_custom_call.1} parent=5 // pred_region
        %s200 = ssub.s32 %s21, 1
        %s201 = sand.u32 %s34, 1
        %s202 = scalar_lea.sflag [#allocation3], %s201
        %s203 = sand.u32 %s34, 1
        %s204 = smul.addr %s203, 8
        %s205 = scalar_lea.vmem [#allocation2], %s204
        // Predicated region
        $region33: #{tpu_custom_call.1} parent=31 // pred_check
          %p206 = pneg %p47
        $region34: #{tpu_custom_call.1} parent=31 // pred_check_branch
          %208 = sbr.rel (%p206) target = $region36
        $region35: #{tpu_custom_call.1} parent=31 // pred_region
          %209 = dma.done %s202, 128
        $region36: #{tpu_custom_call.1} parent=31 // pred_fallthru
          _
        // Predicated region
        $region37: #{tpu_custom_call.1} parent=31 // pred_check
          %p210 = pneg %p68
        $region38: #{tpu_custom_call.1} parent=31 // pred_check_branch
          %212 = sbr.rel (%p210) target = $region40
        $region39: #{tpu_custom_call.1} parent=31 // pred_region
          %213 = dma.done [#allocation6], 512
        $region40: #{tpu_custom_call.1} parent=31 // pred_fallthru
          _
        %s214 = sand.u32 %s34, 1
        %s215 = scalar_lea.sflag [#allocation3], %s214
        %s216 = sand.u32 %s34, 1
        %s217 = smul.addr %s216, 8
        %s218 = scalar_lea.vmem [#allocation2], %s217
        %p219 = pneg %p47
        %p220 = pneg %p44
        %p221 = pneg %p68
        %p222 = pneg %p65
        %p223 = pneg %p89
        %p224 = pneg %p86
        %p225 = pneg %p115
        %p226 = pneg %p112
        %s227 = sand.u32 %s102, 1
        %s228 = scalar_lea.sflag [#allocation4], %s227
        %s229 = sand.u32 %s102, 1
        %s230 = scalar_lea.vmem [#allocation7], %s229
        %p231 = pneg %p141
        %p232 = pneg %p138
        %s233 = sand.u32 %s128, 1
        %s234 = scalar_lea.sflag [#allocation9], %s233
        %s235 = sand.u32 %s128, 1
        %s236 = scalar_lea.vmem [#allocation8], %s235
        %v237 = vld [vmem:[%s205] sm:$0xff]
        %v238 = vld [vmem:[#allocation5] sm:$0xff]
        %v239 = vld [vmem:[#allocation5 + $0x8] sm:$0xff]
        %v240 = vld [vmem:[#allocation5 + $0x10] sm:$0xff]
        %v241 = vld [vmem:[#allocation5 + $0x18] sm:$0xff]
        %v242 = vld [vmem:[%s2] sm:$0x1]
        %v244 = vlaneseq
        %v245 = vshrl.u32 %v244, 7
        %v246 = vsub.s32 0, %v245
        %v247 = vrot.slane %v242, %v246
        %vm249 = vcmask 261120
        %v251 = vsel %vm249, %v237, 0
        %253 = vmatprep.subr.mxu0 0.0
        %254 = vmatpush1.msra.mxu0 0.0
        %255 = vmatprep.subr.mxu0 0.0
        %256 = vmatpush1.msra.mxu0 0.0
        %257 = vmatprep.subr.mxu0 0.0
        %258 = vmatpush1.msra.mxu0 0.0
        %259 = vmatprep.subr.mxu0 0.0
        %260 = vmatpush1.msra.mxu0 0.0
        %261 = vmatprep.subr.mxu0 0.0
        %262 = vmatpush1.msra.mxu0 0.0
        %263 = vmatprep.subr.mxu0 0.0
        %264 = vmatpush1.msra.mxu0 0.0
        %265 = vmatprep.subr.mxu0 0.0
        %266 = vmatpush1.msra.mxu0 0.0
        %267 = vmatprep.subr.mxu0 0.0
        %268 = vmatpush1.msra.mxu0 0.0
        %269 = vmatprep.subr.mxu0 0.0
        %270 = vmatpush1.msra.mxu0 0.0
        %271 = vmatprep.subr.mxu0 0.0
        %272 = vmatpush1.msra.mxu0 0.0
        %273 = vmatprep.subr.mxu0 0.0
        %274 = vmatpush1.msra.mxu0 0.0
        %275 = vmatprep.subr.mxu0 0.0
        %276 = vmatpush1.msra.mxu0 0.0
        %277 = vmatprep.subr.mxu0 0.0
        %278 = vmatpush1.msra.mxu0 %v241
        %279 = vmatprep.subr.mxu0 0.0
        %280 = vmatpush1.msra.mxu0 %v240
        %281 = vmatprep.subr.mxu0 0.0
        %282 = vmatpush1.msra.mxu0 %v239
        %283 = vmatprep.subr.mxu0 0.0
        %284 = vmatpush1.msra.mxu0 %v238
        %285 = vmatprep.subr.mxu0 0.0
        %286 = vmatpush2.msra.mxu0 0.0
        %287 = vmatprep.subr.mxu0 0.0
        %288 = vmatpush2.msra.mxu0 0.0
        %289 = vmatprep.subr.mxu0 0.0
        %290 = vmatpush2.msra.mxu0 0.0
        %291 = vmatprep.subr.mxu0 0.0
        %292 = vmatpush2.msra.mxu0 0.0
        %293 = vmatprep.subr.mxu0 0.0
        %294 = vmatpush2.msra.mxu0 0.0
        %295 = vmatprep.subr.mxu0 0.0
        %296 = vmatpush2.msra.mxu0 0.0
        %297 = vmatprep.subr.mxu0 0.0
        %298 = vmatpush2.msra.mxu0 0.0
        %299 = vmatprep.subr.mxu0 0.0
        %300 = vmatpush2.msra.mxu0 0.0
        %301 = vmatprep.subr.mxu0 0.0
        %302 = vmatpush2.msra.mxu0 0.0
        %303 = vmatprep.subr.mxu0 0.0
        %304 = vmatpush2.msra.mxu0 0.0
        %305 = vmatprep.subr.mxu0 0.0
        %306 = vmatpush2.msra.mxu0 0.0
        %307 = vmatprep.subr.mxu0 0.0
        %308 = vmatpush2.msra.mxu0 0.0
        %309 = vmatprep.subr.mxu0 0.0
        %310 = vmatpush2.msra.mxu0 0.0
        %311 = vmatprep.subr.mxu0 0.0
        %312 = vmatpush2.msra.mxu0 0.0
        %313 = vmatprep.subr.mxu0 0.0
        %314 = vmatpush2.msra.mxu0 0.0
        %315 = vmatprep.subr.mxu0 0.0
        %316 = vmatpush2.msra.mxu0 0.0
        %317 = vmatprep.mubr.f32.mxu0 0.0
        %318 = vmatmul.mubr.f32.gmra.mxu0 %v251
        %v319 = vpop.f32.mrf.mxu0
        %v320 = vadd.f32 %v247, %v319
        %v321 = vpop.f32.mrf.mxu0
        %322 = vdwg.mxu0
        %324 = vrot.lane.b32.xlu0 %v320, 112
        %v325 = vpop.permute.xlu0 %324
        %vm326 = vcmask 130048
        %v327 = vsel %vm326, %v320, 0
        %v329 = vsel %vm326, %v325, 0
        %331 = vmatprep.subr.mxu0 0.0
        %332 = vmatpush1.xpose.msra.mxu0 0.0
        %333 = vmatprep.subr.mxu0 0.0
        %334 = vmatpush1.xpose.msra.mxu0 0.0
        %335 = vmatprep.subr.mxu0 0.0
        %336 = vmatpush1.xpose.msra.mxu0 0.0
        %337 = vmatprep.subr.mxu0 0.0
        %338 = vmatpush1.xpose.msra.mxu0 0.0
        %339 = vmatprep.subr.mxu0 0.0
        %340 = vmatpush1.xpose.msra.mxu0 0.0
        %341 = vmatprep.subr.mxu0 0.0
        %342 = vmatpush1.xpose.msra.mxu0 0.0
        %343 = vmatprep.subr.mxu0 0.0
        %344 = vmatpush1.xpose.msra.mxu0 0.0
        %345 = vmatprep.subr.mxu0 0.0
        %346 = vmatpush1.xpose.msra.mxu0 0.0
        %347 = vmatprep.subr.mxu0 0.0
        %348 = vmatpush1.xpose.msra.mxu0 0.0
        %349 = vmatprep.subr.mxu0 0.0
        %350 = vmatpush1.xpose.msra.mxu0 0.0
        %351 = vmatprep.subr.mxu0 0.0
        %352 = vmatpush1.xpose.msra.mxu0 0.0
        %353 = vmatprep.subr.mxu0 0.0
        %354 = vmatpush1.xpose.msra.mxu0 0.0
        %355 = vmatprep.subr.mxu0 0.0
        %356 = vmatpush1.xpose.msra.mxu0 0.0
        %357 = vmatprep.subr.mxu0 0.0
        %358 = vmatpush1.xpose.msra.mxu0 0.0
        %359 = vmatprep.subr.mxu0 0.0
        %360 = vmatpush1.xpose.msra.mxu0 0.0
        %361 = vmatprep.subr.mxu0 0.0
        %362 = vmatpush1.xpose.msra.mxu0 %v329
        %363 = vmatprep.subr.mxu0 0.0
        %364 = vmatpush2.xpose.msra.mxu0 0.0
        %365 = vmatprep.subr.mxu0 0.0
        %366 = vmatpush2.xpose.msra.mxu0 0.0
        %367 = vmatprep.subr.mxu0 0.0
        %368 = vmatpush2.xpose.msra.mxu0 0.0
        %369 = vmatprep.subr.mxu0 0.0
        %370 = vmatpush2.xpose.msra.mxu0 0.0
        %371 = vmatprep.subr.mxu0 0.0
        %372 = vmatpush2.xpose.msra.mxu0 0.0
        %373 = vmatprep.subr.mxu0 0.0
        %374 = vmatpush2.xpose.msra.mxu0 0.0
        %375 = vmatprep.subr.mxu0 0.0
        %376 = vmatpush2.xpose.msra.mxu0 0.0
        %377 = vmatprep.subr.mxu0 0.0
        %378 = vmatpush2.xpose.msra.mxu0 0.0
        %379 = vmatprep.subr.mxu0 0.0
        %380 = vmatpush2.xpose.msra.mxu0 0.0
        %381 = vmatprep.subr.mxu0 0.0
        %382 = vmatpush2.xpose.msra.mxu0 0.0
        %383 = vmatprep.subr.mxu0 0.0
        %384 = vmatpush2.xpose.msra.mxu0 0.0
        %385 = vmatprep.subr.mxu0 0.0
        %386 = vmatpush2.xpose.msra.mxu0 0.0
        %387 = vmatprep.subr.mxu0 0.0
        %388 = vmatpush2.xpose.msra.mxu0 0.0
        %389 = vmatprep.subr.mxu0 0.0
        %390 = vmatpush2.xpose.msra.mxu0 0.0
        %391 = vmatprep.subr.mxu0 0.0
        %392 = vmatpush2.xpose.msra.mxu0 0.0
        %393 = vmatprep.subr.mxu0 0.0
        %394 = vmatpush2.xpose.msra.mxu0 0.0
        %395 = vmatprep.mubr.f32.mxu0 0.0
        %396 = vmatmul.mubr.f32.gmra.mxu0 %v327
        %v397 = vpop.f32.mrf.mxu0
        %v398 = vadd.f32 0.0, %v397
        %v399 = vpop.f32.mrf.mxu0
        %400 = vdwg.mxu0
        %vm401 = vcmask 64512
        %v402 = vsel %vm401, %v398, -inf
        %403 = vmax.xlane.f32.xlu0 %v402
        %v404 = vpop.xlane.xlu0 %403
        %v405 = vsub.f32 %v398, %v404
        %v406 = vmul.f32 %v405, 1.442695
        %v407 = vpow.pop %v406
        %v408 = vsel %vm401, %v407, 0.0
        %409 = vadd.xlane.f32.xlu0 %v408
        %v410 = vpop.xlane.xlu0 %409
        %v411 = vrcp.pop %v410
        %v412 = vmul.f32 %v407, %v411
        %413 = vrot.lane.b32.xlu0 %v320, 96
        %v414 = vpop.permute.xlu0 %413
        %v417 = vsel %vm401, %v412, 0
        %419 = vmatprep.subr.mxu0 0.0
        %420 = vmatpush1.msra.mxu0 0.0
        %421 = vmatprep.subr.mxu0 0.0
        %422 = vmatpush1.msra.mxu0 0.0
        %423 = vmatprep.subr.mxu0 0.0
        %424 = vmatpush1.msra.mxu0 0.0
        %425 = vmatprep.subr.mxu0 0.0
        %426 = vmatpush1.msra.mxu0 0.0
        %427 = vmatprep.subr.mxu0 0.0
        %428 = vmatpush1.msra.mxu0 0.0
        %429 = vmatprep.subr.mxu0 0.0
        %430 = vmatpush1.msra.mxu0 0.0
        %431 = vmatprep.subr.mxu0 0.0
        %432 = vmatpush1.msra.mxu0 0.0
        %433 = vmatprep.subr.mxu0 0.0
        %434 = vmatpush1.msra.mxu0 0.0
        %435 = vmatprep.subr.mxu0 0.0
        %436 = vmatpush1.msra.mxu0 0.0
        %437 = vmatprep.subr.mxu0 0.0
        %438 = vmatpush1.msra.mxu0 0.0
        %439 = vmatprep.subr.mxu0 0.0
        %440 = vmatpush1.msra.mxu0 0.0
        %441 = vmatprep.subr.mxu0 0.0
        %442 = vmatpush1.msra.mxu0 0.0
        %443 = vmatprep.subr.mxu0 0.0
        %444 = vmatpush1.msra.mxu0 0.0
        %445 = vmatprep.subr.mxu0 0.0
        %446 = vmatpush1.msra.mxu0 0.0
        %447 = vmatprep.subr.mxu0 0.0
        %448 = vmatpush1.msra.mxu0 0.0
        %449 = vmatprep.subr.mxu0 0.0
        %450 = vmatpush1.msra.mxu0 %v414
        %451 = vmatprep.subr.mxu0 0.0
        %452 = vmatpush2.msra.mxu0 0.0
        %453 = vmatprep.subr.mxu0 0.0
        %454 = vmatpush2.msra.mxu0 0.0
        %455 = vmatprep.subr.mxu0 0.0
        %456 = vmatpush2.msra.mxu0 0.0
        %457 = vmatprep.subr.mxu0 0.0
        %458 = vmatpush2.msra.mxu0 0.0
        %459 = vmatprep.subr.mxu0 0.0
        %460 = vmatpush2.msra.mxu0 0.0
        %461 = vmatprep.subr.mxu0 0.0
        %462 = vmatpush2.msra.mxu0 0.0
        %463 = vmatprep.subr.mxu0 0.0
        %464 = vmatpush2.msra.mxu0 0.0
        %465 = vmatprep.subr.mxu0 0.0
        %466 = vmatpush2.msra.mxu0 0.0
        %467 = vmatprep.subr.mxu0 0.0
        %468 = vmatpush2.msra.mxu0 0.0
        %469 = vmatprep.subr.mxu0 0.0
        %470 = vmatpush2.msra.mxu0 0.0
        %471 = vmatprep.subr.mxu0 0.0
        %472 = vmatpush2.msra.mxu0 0.0
        %473 = vmatprep.subr.mxu0 0.0
        %474 = vmatpush2.msra.mxu0 0.0
        %475 = vmatprep.subr.mxu0 0.0
        %476 = vmatpush2.msra.mxu0 0.0
        %477 = vmatprep.subr.mxu0 0.0
        %478 = vmatpush2.msra.mxu0 0.0
        %479 = vmatprep.subr.mxu0 0.0
        %480 = vmatpush2.msra.mxu0 0.0
        %481 = vmatprep.subr.mxu0 0.0
        %482 = vmatpush2.msra.mxu0 0.0
        %483 = vmatprep.mubr.f32.mxu0 0.0
        %484 = vmatmul.mubr.f32.gmra.mxu0 %v417
        %v485 = vpop.f32.mrf.mxu0
        %v486 = vadd.f32 0.0, %v485
        %v487 = vpop.f32.mrf.mxu0
        %488 = vdwg.mxu0
        %v489 = vcombine.high %v486, 0.0
        %v491 = vunpack.c.l.s4 1983009808
        %v492 = vunpack.c.0.s8 %v491
        %v493 = vlaneseq
        %v494 = vshrl.u32 %v493, 7
        %v495 = vsub.s32 %v492, %v494
        %v496 = vrot.slane %v486, %v495
        %v498 = vunpack.c.l.s4 1983009808
        %v499 = vunpack.c.0.s8 %v498
        %v500 = vlaneseq
        %v501 = vshrl.u32 %v500, 7
        %v502 = vsub.s32 %v499, %v501
        %v503 = vrot.slane %v489, %v502
        %v504 = vcombine.high %v496, 0.0
        %v506 = vunpack.c.l.s4 1934713408
        %v507 = vunpack.c.0.s8 %v506
        %v508 = vlaneseq
        %v509 = vshrl.u32 %v508, 7
        %v510 = vsub.s32 %v507, %v509
        %v511 = vrot.slane %v496, %v510
        %v513 = vunpack.c.l.s4 1934713408
        %v514 = vunpack.c.0.s8 %v513
        %v515 = vlaneseq
        %v516 = vshrl.u32 %v515, 7
        %v517 = vsub.s32 %v514, %v516
        %v518 = vrot.slane %v504, %v517
        %v519 = vcombine.high %v503, 0.0
        %v521 = vunpack.c.l.s4 1934713408
        %v522 = vunpack.c.0.s8 %v521
        %v523 = vlaneseq
        %v524 = vshrl.u32 %v523, 7
        %v525 = vsub.s32 %v522, %v524
        %v526 = vrot.slane %v503, %v525
        %v528 = vunpack.c.l.s4 1934713408
        %v529 = vunpack.c.0.s8 %v528
        %v530 = vlaneseq
        %v531 = vshrl.u32 %v530, 7
        %v532 = vsub.s32 %v529, %v531
        %v533 = vrot.slane %v519, %v532
        %v534 = vcombine.high %v511, 0.0
        %v535 = vcombine.high %v518, 0.0
        %v536 = vcombine.high %v526, 0.0
        %v537 = vcombine.high %v533, 0.0
        %539 = vrot.lane.b32.xlu0 %v534, 16
        %v540 = vpop.permute.xlu0 %539
        %543 = vrot.lane.b32.xlu0 %v518, 32
        %v544 = vpop.permute.xlu0 %543
        %547 = vrot.lane.b32.xlu0 %v535, 48
        %v548 = vpop.permute.xlu0 %547
        %551 = vrot.lane.b32.xlu0 %v526, 64
        %v552 = vpop.permute.xlu0 %551
        %555 = vrot.lane.b32.xlu0 %v536, 80
        %v556 = vpop.permute.xlu0 %555
        %559 = vrot.lane.b32.xlu0 %v533, 96
        %v560 = vpop.permute.xlu0 %559
        %563 = vrot.lane.b32.xlu0 %v537, 112
        %v564 = vpop.permute.xlu0 %563
        %v566 = vsel %vm326, %v511, %v540
        %v567 = vsel %vm249, %v566, %v544
        %vm568 = vcmask 392192
        %v569 = vsel %vm568, %v567, %v548
        %vm570 = vcmask 523264
        %v571 = vsel %vm570, %v569, %v552
        %vm572 = vcmask 654336
        %v573 = vsel %vm572, %v571, %v556
        %vm574 = vcmask 785408
        %v575 = vsel %vm574, %v573, %v560
        %vm576 = vcmask 916480
        %v577 = vsel %vm576, %v575, %v564
        %578 = vst [vmem:[%s230] sm:$0x1] %v577
        %v579 = vcombine.high %v412, 0.0
        %v581 = vunpack.c.l.s4 1983009808
        %v582 = vunpack.c.0.s8 %v581
        %v583 = vlaneseq
        %v584 = vshrl.u32 %v583, 7
        %v585 = vsub.s32 %v582, %v584
        %v586 = vrot.slane %v412, %v585
        %v588 = vunpack.c.l.s4 1983009808
        %v589 = vunpack.c.0.s8 %v588
        %v590 = vlaneseq
        %v591 = vshrl.u32 %v590, 7
        %v592 = vsub.s32 %v589, %v591
        %v593 = vrot.slane %v579, %v592
        %v594 = vcombine.high %v586, 0.0
        %v596 = vunpack.c.l.s4 1934713408
        %v597 = vunpack.c.0.s8 %v596
        %v598 = vlaneseq
        %v599 = vshrl.u32 %v598, 7
        %v600 = vsub.s32 %v597, %v599
        %v601 = vrot.slane %v586, %v600
        %v603 = vunpack.c.l.s4 1934713408
        %v604 = vunpack.c.0.s8 %v603
        %v605 = vlaneseq
        %v606 = vshrl.u32 %v605, 7
        %v607 = vsub.s32 %v604, %v606
        %v608 = vrot.slane %v594, %v607
        %v609 = vcombine.high %v593, 0.0
        %v611 = vunpack.c.l.s4 1934713408
        %v612 = vunpack.c.0.s8 %v611
        %v613 = vlaneseq
        %v614 = vshrl.u32 %v613, 7
        %v615 = vsub.s32 %v612, %v614
        %v616 = vrot.slane %v593, %v615
        %v618 = vunpack.c.l.s4 1934713408
        %v619 = vunpack.c.0.s8 %v618
        %v620 = vlaneseq
        %v621 = vshrl.u32 %v620, 7
        %v622 = vsub.s32 %v619, %v621
        %v623 = vrot.slane %v609, %v622
        %v624 = vcombine.high %v601, 0.0
        %v625 = vcombine.high %v608, 0.0
        %v626 = vcombine.high %v616, 0.0
        %v627 = vcombine.high %v623, 0.0
        %629 = vrot.lane.b32.xlu0 %v624, 8
        %v630 = vpop.permute.xlu0 %629
        %633 = vrot.lane.b32.xlu0 %v608, 16
        %v634 = vpop.permute.xlu0 %633
        %637 = vrot.lane.b32.xlu0 %v625, 24
        %v638 = vpop.permute.xlu0 %637
        %641 = vrot.lane.b32.xlu0 %v616, 32
        %v642 = vpop.permute.xlu0 %641
        %645 = vrot.lane.b32.xlu0 %v626, 40
        %v646 = vpop.permute.xlu0 %645
        %649 = vrot.lane.b32.xlu0 %v623, 48
        %v650 = vpop.permute.xlu0 %649
        %653 = vrot.lane.b32.xlu0 %v627, 56
        %v654 = vpop.permute.xlu0 %653
        %v656 = vsel %vm401, %v601, %v630
        %v657 = vsel %vm326, %v656, %v634
        %vm658 = vcmask 195584
        %v659 = vsel %vm658, %v657, %v638
        %v660 = vsel %vm249, %v659, %v642
        %vm661 = vcmask 326656
        %v662 = vsel %vm661, %v660, %v646
        %v663 = vsel %vm568, %v662, %v650
        %vm664 = vcmask 457728
        %v665 = vsel %vm664, %v663, %v654
        %vm666 = vcmask 516096
        %667 = vst.msk [vmem:[%s236] sm:$0x1] %vm666, %v665
        %s668 = sand.u32 %s102, 1
        %s669 = scalar_lea.sflag [#allocation4], %s668
        %s670 = sand.u32 %s102, 1
        %s671 = scalar_lea.vmem [#allocation7], %s670
        %s672 = sand.u32 %s128, 1
        %s673 = scalar_lea.sflag [#allocation9], %s672
        %s674 = sand.u32 %s128, 1
        %s675 = scalar_lea.vmem [#allocation8], %s674
        // Predicated region
        $region41: #{tpu_custom_call.1} parent=31 // pred_check
          %p676 = pneg %p112
        $region42: #{tpu_custom_call.1} parent=31 // pred_check_branch
          %678 = sbr.rel (%p676) target = $region44
        $region43: #{tpu_custom_call.1} parent=31 // pred_region
          %s680 = ssub.s32 16, 16
          %681 = vsyncadd %s669, %s680
          %s682 = smul.addr %s26, 16
          %s683 = scalar_lea.hbm %s3, %s682
          %s685 = sshll.u32 %s671, 4
          %s686 = int_to_ptr.vmem [resolvable:$true] %s685
          %688 = dma.vmem_to_hbm [thread:$0]  %s686, 16, %s683, %s669
        $region44: #{tpu_custom_call.1} parent=31 // pred_fallthru
          _
        // Predicated region
        $region45: #{tpu_custom_call.1} parent=31 // pred_check
          %p689 = pneg %p138
        $region46: #{tpu_custom_call.1} parent=31 // pred_check_branch
          %691 = sbr.rel (%p689) target = $region48
        $region47: #{tpu_custom_call.1} parent=31 // pred_region
          %s693 = ssub.s32 16, 16
          %694 = vsyncadd %s673, %s693
          %s695 = smul.addr %s26, 16
          %s696 = scalar_lea.hbm %s4, %s695
          %s698 = sshll.u32 %s675, 4
          %s699 = int_to_ptr.vmem [resolvable:$true] %s698
          %701 = dma.vmem_to_hbm [thread:$0]  %s699, 16, %s696, %s673
        $region48: #{tpu_custom_call.1} parent=31 // pred_fallthru
          _
      $region32: #{tpu_custom_call.1} parent=5 // pred_fallthru
        _
      %p702 = scmp.le.s32.totalorder 2, %s21
      // Predicated region
      $region49: #{tpu_custom_call.1} parent=5 // pred_check
        %p703 = pneg %p702
      $region50: #{tpu_custom_call.1} parent=5 // pred_check_branch
        %705 = sbr.rel (%p703) target = $region52
      $region51: #{tpu_custom_call.1} parent=5 // pred_region
        %s706 = ssub.s32 %s21, 2
        // Predicated region
        $region53: #{tpu_custom_call.1} parent=51 // pred_check
          %p707 = pneg %p118
        $region54: #{tpu_custom_call.1} parent=51 // pred_check_branch
          %709 = sbr.rel (%p707) target = $region56
        $region55: #{tpu_custom_call.1} parent=51 // pred_region
          %s710 = sand.u32 %s103, 1
          %s711 = scalar_lea.sflag [#allocation4], %s710
          %s712 = sand.u32 %s103, 1
          %s713 = scalar_lea.vmem [#allocation7], %s712
          %714 = dma.done %s711, 16
        $region56: #{tpu_custom_call.1} parent=51 // pred_fallthru
          _
        // Predicated region
        $region57: #{tpu_custom_call.1} parent=51 // pred_check
          %p715 = pneg %p144
        $region58: #{tpu_custom_call.1} parent=51 // pred_check_branch
          %717 = sbr.rel (%p715) target = $region60
        $region59: #{tpu_custom_call.1} parent=51 // pred_region
          %s718 = sand.u32 %s129, 1
          %s719 = scalar_lea.sflag [#allocation9], %s718
          %s720 = sand.u32 %s129, 1
          %s721 = scalar_lea.vmem [#allocation8], %s720
          %722 = dma.done %s719, 16
        $region60: #{tpu_custom_call.1} parent=51 // pred_fallthru
          _
      $region52: #{tpu_custom_call.1} parent=5 // pred_fallthru
        _
    $region6: #{tpu_custom_call.1} parent=1 // loop_footer
      %s25 = sadd.s32 1, %s21
    $region7: #{tpu_custom_call.1} parent=1 // loop_footer_branch
      %20 = sbr.rel target = $region3
    $region8: #{tpu_custom_call.1} parent=1 // loop_exit
      _
    %723 = vsyncpa [#allocation3], 1
    %s724 = scalar_lea.sflag [#allocation3], 1
    %725 = vsyncpa %s724, 1
    %726 = vsyncpa [#allocation6], 1
    %727 = vsyncpa [#allocation4], 1
    %s728 = scalar_lea.sflag [#allocation4], 1
    %729 = vsyncpa %s728, 1
    %730 = vsyncpa [#allocation9], 1
    %s731 = scalar_lea.sflag [#allocation9], 1
    %732 = vsyncpa %s731, 1

</llo_original>
